<compile_context>
chip_gen: v5e
topology: v5e:2x2
jax: 0.10.0
libtpu: 0.0.40
codegen_flags: <defaults>
</compile_context>

<pallas_src>
import functools

import jax
import jax.numpy as jnp
from jax import lax
from jax.experimental import pallas as pl
from jax.experimental.pallas import tpu as pltpu

LANES = 128
MAX_BLOCK_ROWS = 1024  # 1024 x 128 f32 = 512 KiB per pipeline buffer


def _round_up(x, m):
    return ((x + m - 1) // m) * m


def _clip_boxes_kernel(x_ref, o_ref, *, wmax, hmax):
    """x_ref/o_ref: VMEM (block_rows, 128) lane-dense slab of flattened boxes."""
    x = x_ref[...]
    # Coordinate index repeats with period 4 along the flat layout; because
    # 128 % 4 == 0 it depends only on the lane index, so bounds are a single
    # (1, LANES) row vector broadcast across sublanes.
    coord = lax.broadcasted_iota(jnp.int32, (1, x.shape[1]), dimension=1) % 4
    lo = jnp.where(coord < 2,
                   jnp.array(0.0, x.dtype),
                   jnp.array(-jnp.inf, x.dtype))
    hi = jnp.where(coord < 2,
                   jnp.array(jnp.inf, x.dtype),
                   jnp.where(coord == 2,
                             jnp.array(wmax, x.dtype),
                             jnp.array(hmax, x.dtype)))
    o_ref[...] = jnp.minimum(jnp.maximum(x, lo), hi)


def clip_boxes_hw(boxes, height, width):
    """Clip boxes against a (height, width) image; H/W are static Python ints."""
    B, N, C4 = boxes.shape
    assert C4 == 4
    dtype = boxes.dtype
    total = B * N * 4

    # Lane-dense slab: pad flat length up to grid * block_rows * 128.
    rows_needed = pl.cdiv(total, LANES)
    block_rows = min(MAX_BLOCK_ROWS, _round_up(rows_needed, 8))
    grid = pl.cdiv(rows_needed, block_rows)
    rows_padded = grid * block_rows
    pad = rows_padded * LANES - total

    flat = boxes.reshape(total)
    if pad:
        flat = jnp.pad(flat, (0, pad))
    slab = flat.reshape(rows_padded, LANES)

    kernel = functools.partial(
        _clip_boxes_kernel,
        wmax=float(width - 1),
        hmax=float(height - 1),
    )

    out = pl.pallas_call(
        kernel,
        out_shape=jax.ShapeDtypeStruct((rows_padded, LANES), dtype),
        grid=(grid,),
        in_specs=[pl.BlockSpec((block_rows, LANES), lambda i: (i, 0))],
        out_specs=pl.BlockSpec((block_rows, LANES), lambda i: (i, 0)),
        compiler_params=pltpu.CompilerParams(
            dimension_semantics=("parallel",)),
    )(slab)

    return out.reshape(rows_padded * LANES)[:total].reshape(B, N, 4)


def clip_boxes(boxes, img):
    """Drop-in equivalent of ClipBoxes.forward: only img's shape is consumed."""
    _, _, H, W = img.shape
    return clip_boxes_hw(boxes, int(H), int(W))


if __name__ == "__main__":
    key = jax.random.PRNGKey(0)
    kb, ki = jax.random.split(key)

    B, N = 2, 8           # batch, number of boxes
    C, H, W = 4, 16, 16   # image channels / spatial

    # boxes with values deliberately spilling outside [0, W-1] / [0, H-1]
    boxes = jax.random.uniform(kb, (B, N, 4), dtype=jnp.float32,
                               minval=-8.0, maxval=24.0)
    img = jax.random.normal(ki, (B, C, H, W), dtype=jnp.float32)

    out = clip_boxes(boxes, img)
    out = jax.block_until_ready(out)

    # pure-JAX reference check
    ref = boxes
    ref = ref.at[:, :, 0].set(jnp.maximum(ref[:, :, 0], 0.0))
    ref = ref.at[:, :, 1].set(jnp.maximum(ref[:, :, 1], 0.0))
    ref = ref.at[:, :, 2].set(jnp.minimum(ref[:, :, 2], W - 1))
    ref = ref.at[:, :, 3].set(jnp.minimum(ref[:, :, 3], H - 1))
    assert out.shape == ref.shape
    assert jnp.allclose(out, ref), "mismatch vs reference"

    print("KERNEL_OK")
</pallas_src>

<mosaic_0001>
module attributes {stable_mosaic.version = 11 : i64} {
  func.func @_clip_boxes_kernel(%arg0: i32, %arg1: memref<8x128xf32, #tpu.memory_space<vmem>>, %arg2: memref<8x128xf32, #tpu.memory_space<vmem>>) attributes {dimension_semantics = [#tpu.dimension_semantics<parallel>], iteration_bounds = array<i64: 1>, scalar_prefetch = 0 : i64, scratch_operands = 0 : i64, tpu.core_type = #tpu.core_type<tc>, window_params = [{transform_indices = @transform_0, window_bounds = array<i64: 8, 128>}, {transform_indices = @transform_1, window_bounds = array<i64: 8, 128>}]} {
    %c0 = arith.constant 0 : index
    %c0_0 = arith.constant 0 : index
    %0 = vector.load %arg1[%c0, %c0_0] : memref<8x128xf32, #tpu.memory_space<vmem>>, vector<8x128xf32>
    %1 = tpu.iota {dimensions = array<i32: 1>} : vector<1x128xi32>
    %c4_i32 = arith.constant 4 : i32
    %c0_i32 = arith.constant 0 : i32
    %2 = arith.cmpi eq, %c4_i32, %c0_i32 : i32
    %c1_i32 = arith.constant 1 : i32
    %3 = arith.select %2, %c1_i32, %c4_i32 : i32
    %4 = vector.broadcast %3 : i32 to vector<1x128xi32>
    %5 = arith.remsi %1, %4 : vector<1x128xi32>
    %c0_i32_1 = arith.constant 0 : i32
    %6 = vector.broadcast %c0_i32_1 : i32 to vector<1x128xi32>
    %7 = arith.cmpi ne, %5, %6 : vector<1x128xi32>
    %c0_i32_2 = arith.constant 0 : i32
    %8 = vector.broadcast %c0_i32_2 : i32 to vector<1x128xi32>
    %9 = arith.cmpi slt, %5, %8 : vector<1x128xi32>
    %c0_i32_3 = arith.constant 0 : i32
    %10 = arith.cmpi slt, %3, %c0_i32_3 : i32
    %11 = vector.broadcast %10 : i1 to vector<1x128xi1>
    %12 = vector.broadcast %11 : vector<1x128xi1> to vector<1x128xi1>
    %13 = arith.xori %9, %12 : vector<1x128xi1>
    %14 = arith.andi %13, %7 : vector<1x128xi1>
    %15 = vector.broadcast %3 : i32 to vector<1x128xi32>
    %16 = arith.addi %5, %15 : vector<1x128xi32>
    %17 = arith.select %14, %16, %5 : vector<1x128xi1>, vector<1x128xi32>
    %c2_i32 = arith.constant 2 : i32
    %18 = vector.broadcast %c2_i32 : i32 to vector<1x128xi32>
    %19 = arith.cmpi slt, %17, %18 : vector<1x128xi32>
    %cst = arith.constant 0.000000e+00 : f32
    %cst_4 = arith.constant 0xFF800000 : f32
    %20 = vector.broadcast %cst : f32 to vector<1x128xf32>
    %21 = vector.broadcast %cst_4 : f32 to vector<1x128xf32>
    %22 = arith.select %19, %20, %21 : vector<1x128xi1>, vector<1x128xf32>
    %c2_i32_5 = arith.constant 2 : i32
    %23 = vector.broadcast %c2_i32_5 : i32 to vector<1x128xi32>
    %24 = arith.cmpi slt, %17, %23 : vector<1x128xi32>
    %c2_i32_6 = arith.constant 2 : i32
    %25 = vector.broadcast %c2_i32_6 : i32 to vector<1x128xi32>
    %26 = arith.cmpi eq, %17, %25 : vector<1x128xi32>
    %cst_7 = arith.constant 1.500000e+01 : f32
    %cst_8 = arith.constant 1.500000e+01 : f32
    %27 = vector.broadcast %cst_7 : f32 to vector<1x128xf32>
    %28 = vector.broadcast %cst_8 : f32 to vector<1x128xf32>
    %29 = arith.select %26, %27, %28 : vector<1x128xi1>, vector<1x128xf32>
    %cst_9 = arith.constant 0x7F800000 : f32
    %30 = vector.broadcast %cst_9 : f32 to vector<1x128xf32>
    %31 = arith.select %24, %30, %29 : vector<1x128xi1>, vector<1x128xf32>
    %32 = vector.broadcast %22 : vector<1x128xf32> to vector<8x128xf32>
    %33 = arith.maximumf %0, %32 : vector<8x128xf32>
    %34 = vector.broadcast %31 : vector<1x128xf32> to vector<8x128xf32>
    %35 = arith.minimumf %33, %34 : vector<8x128xf32>
    %c0_10 = arith.constant 0 : index
    %c0_11 = arith.constant 0 : index
    %36 = vector.load %arg2[%c0_10, %c0_11] : memref<8x128xf32, #tpu.memory_space<vmem>>, vector<8x128xf32>
    tpu.vector_store %arg2[%c0_10, %c0_11], %35 {strides = array<i32>} : memref<8x128xf32, #tpu.memory_space<vmem>>, vector<8x128xf32>,
    return
  }
  func.func @transform_0(%arg0: i32) -> (i32, i32) {
    %c0_i32 = arith.constant 0 : i32
    %c0_i32_0 = arith.constant 0 : i32
    return %arg0, %c0_i32 : i32, i32
  }
  func.func @transform_1(%arg0: i32) -> (i32, i32) {
    %c0_i32 = arith.constant 0 : i32
    %c0_i32_0 = arith.constant 0 : i32
    return %arg0, %c0_i32 : i32, i32
  }
}

</mosaic_0001>

<llo_original>
// kernel: tpu_custom_call.1
$region0: #{tpu_custom_call.1}
  #allocation0 [shape = 'u32[]', space=smem, size = 0x4, offset = 0x4, fixed_abs, tag = 'smem constant byte address 0x4 - core index']
  #allocation1 [shape = 'u32[72,128]{1,0:T(1,128)}', space=vmem, size = 0x9000, scoped, tag = 'internal scratch']
  %s0 = inlined_call_operand.hbm [shape: f32[8,128], index: 0, kind: input, shape index: {}]
  %s1 = inlined_call_operand.hbm [shape: f32[8,128], index: 1, kind: output, shape index: {}]
  %s2 = sld [smem:[#allocation0]]
  $region18: #{tpu_custom_call.1} parent=0
    _
  %s4 = ssub.s32 1, %s2
  %s5 = scalar_select 0, %s4, %s2
  $region1: #{tpu_custom_call.1} parent=0
    #allocation2 [shape = 'u8[4096]{0}', space=vmem, size = 0x1000, scoped, tag = 'input window, operand 0, single buffered']
    #allocation3 [shape = 's32[1]{0}', space=sflag, size = 0x4, scoped, tag = 'scoped memory for tpu_custom_call.1']
    #allocation4 [shape = 's32[1]{0}', space=sflag, size = 0x4, scoped, tag = 'scoped memory for tpu_custom_call.1']
    #allocation5 [shape = 'u8[4096]{0}', space=vmem, size = 0x1000, scoped, tag = 'output window, operand 0, single buffered']
    %6 = vsyncpa [#allocation3], 0
    %7 = vsyncpa [#allocation4], 0
    // Predicated region
    $region2: #{tpu_custom_call.1} parent=1 // pred_check
      _
    $region3: #{tpu_custom_call.1} parent=1 // pred_check_branch
      %9 = sbr.rel (0) target = $region5
    $region4: #{tpu_custom_call.1} parent=1 // pred_region
      %11 = vsyncadd [#allocation3], 0
      %s13 = sshll.u32 %s0, 4
      %s14 = int_to_ptr.hbm [resolvable:$true] %s13
      %s15 = sshll.u32 [#allocation2], 4
      %s16 = int_to_ptr.vmem [resolvable:$true] %s15
      %18 = dma.hbm_to_vmem [thread:$0]  %s14, 128, %s16, [#allocation3]
    $region5: #{tpu_custom_call.1} parent=1 // pred_fallthru
      _
    // Predicated region
    $region6: #{tpu_custom_call.1} parent=1 // pred_check
      _
    $region7: #{tpu_custom_call.1} parent=1 // pred_check_branch
      %20 = sbr.rel (0) target = $region9
    $region8: #{tpu_custom_call.1} parent=1 // pred_region
      %22 = dma.done [#allocation3], 128
    $region9: #{tpu_custom_call.1} parent=1 // pred_fallthru
      _
    %v23 = vld [vmem:[#allocation2] sm:$0xff]
    %v24 = vlaneseq
    %v25 = vand.u32 %v24, 127
    %vm26 = vcmp.lt.s32.totalorder %v25, 0
    %v27 = vsub.s32 0, %v25
    %v28 = vsel %vm26, %v27, %v25
    %v29 = vshrl.u32 %v28, 2
    %v30 = vand.u32 %v28, 3
    %v31 = vsub.s32 0, %v30
    %v32 = vsel %vm26, %v31, %v30
    %vm33 = vcmp.ne.s32.totalorder %v32, 0
    %vm34 = vcmp.lt.s32.totalorder %v32, 0
    %vm35 = vmand %vm34, %vm33
    %v36 = vadd.s32 %v32, 4
    %v37 = vsel %vm35, %v36, %v32
    %vm38 = vcmp.lt.s32.totalorder %v37, 2
    %v39 = vsel %vm38, 0.0, -inf
    %v40 = vsel %vm38, inf, 15.0
    %v41 = vmax.f32 %v23, %v39
    %v42 = vmin.f32 %v41, %v40
    %43 = vst [vmem:[#allocation5] sm:$0xff] %v42
    // Predicated region
    $region10: #{tpu_custom_call.1} parent=1 // pred_check
      _
    $region11: #{tpu_custom_call.1} parent=1 // pred_check_branch
      %45 = sbr.rel (0) target = $region13
    $region12: #{tpu_custom_call.1} parent=1 // pred_region
      %47 = vsyncadd [#allocation4], 0
      %s49 = sshll.u32 [#allocation5], 4
      %s50 = int_to_ptr.vmem [resolvable:$true] %s49
      %s51 = sshll.u32 %s1, 4
      %s52 = int_to_ptr.hbm [resolvable:$true] %s51
      %54 = dma.vmem_to_hbm [thread:$0]  %s50, 128, %s52, [#allocation4]
    $region13: #{tpu_custom_call.1} parent=1 // pred_fallthru
      _
    // Predicated region
    $region14: #{tpu_custom_call.1} parent=1 // pred_check
      _
    $region15: #{tpu_custom_call.1} parent=1 // pred_check_branch
      %56 = sbr.rel (0) target = $region17
    $region16: #{tpu_custom_call.1} parent=1 // pred_region
      %58 = dma.done [#allocation4], 128
    $region17: #{tpu_custom_call.1} parent=1 // pred_fallthru
      _
    %59 = vsyncpa [#allocation3], 1
    %60 = vsyncpa [#allocation4], 1

</llo_original>
